<compile_context>
chip_gen: v6e
topology: v6e:2x2x1
jax: 0.10.0
libtpu: 0.0.40
codegen_flags: <defaults>
</compile_context>

<pallas_src>
import functools

import jax
import jax.numpy as jnp
from jax.experimental import pallas as pl
from jax.experimental.pallas import tpu as pltpu


def _scse_kernel(x_ref, w1_ref, b1_ref, w2t_ref, b2_ref, ws_ref, bs_ref, o_ref,
                 *, inv_hw):
    # x_ref: [NB, C, HWp] block (NB batch elements); HWp (lane axis) is a
    # multiple of 128; padded lanes/batches are zero.
    x = x_ref[...].astype(jnp.float32)                                   # [NB, C, HWp]

    # ---- cSE branch: AdaptiveAvgPool2d(1) -> 1x1 conv -> ReLU -> 1x1 conv -> sigmoid
    # Global average pool over HW (lane reduce); divide by the TRUE H*W so the
    # zero-padded lanes do not bias the mean.
    pooled = jnp.sum(x, axis=2, keepdims=True) * inv_hw                  # [NB, C, 1]

    # Squeeze: h[b, cr] = sum_c pooled[b, c] * w1[c, cr] + b1[cr]
    h = jnp.sum(w1_ref[...][None] * pooled, axis=1, keepdims=True) + b1_ref[...]  # [NB, 1, Cr]
    h = jnp.maximum(h, 0.0)

    # Excite: cse[b, c] = sigmoid(sum_cr w2t[c, cr] * h[b, cr] + b2[c])
    cse = jax.nn.sigmoid(
        jnp.sum(w2t_ref[...][None] * h, axis=2, keepdims=True) + b2_ref[...])     # [NB, C, 1]

    # ---- sSE branch: 1x1 conv C->1 -> sigmoid (mul by ws + sublane reduce over C).
    sse = jax.nn.sigmoid(
        jnp.sum(x * ws_ref[...][None], axis=1, keepdims=True) + bs_ref[0, 0])     # [NB, 1, HWp]

    # ---- x * cSE(x) + x * sSE(x)  ==  x * (cse + sse)   (fused epilogue)
    o_ref[...] = (x * (cse + sse)).astype(o_ref.dtype)


def scse_attention(x_nchw, w1, b1, w2t, b2, ws, bs, *, target_block_bytes=2 << 20):
    """x_nchw: [N, C, H, W].  Returns [N, C, H, W].

    Weights (1x1 convs expressed for channels-on-sublanes layout):
      w1  : [C, Cr]   cSE conv1 (C -> C/r)
      b1  : [1, Cr]
      w2t : [C, Cr]   cSE conv2 (C/r -> C), stored transposed
      b2  : [C, 1]
      ws  : [C, 1]    sSE conv (C -> 1)
      bs  : [1, 1]    scalar bias (SMEM)
    """
    N, C, H, W = x_nchw.shape
    HW = H * W
    Cr = w1.shape[1]
    itemsize = jnp.dtype(x_nchw.dtype).itemsize

    # ---- lane-dense HW: pad up to a multiple of 128 (zeros; mean uses true HW).
    HWp = ((HW + 127) // 128) * 128
    x = x_nchw.reshape(N, C, HW)                      # free view, no data movement
    if HWp != HW:
        x = jnp.pad(x, ((0, 0), (0, 0), (0, HWp - HW)))

    # ---- batch packing: NB batch elements per grid block, block ~target_block_bytes.
    per_batch_bytes = C * HWp * itemsize
    NB = int(max(1, min(N, target_block_bytes // max(per_batch_bytes, 1))))
    Np = ((N + NB - 1) // NB) * NB
    if Np != N:
        x = jnp.pad(x, ((0, Np - N), (0, 0), (0, 0)))  # zero rows, cropped below

    # ---- VMEM budget from actual block sizes:
    # double-buffered (in + out) blocks + f32 working copies in the kernel + slack.
    block_bytes = NB * per_batch_bytes
    f32_work = 3 * NB * C * HWp * 4
    vmem_need = 4 * block_bytes + f32_work + (2 << 20)
    vmem_limit = max(32 << 20, vmem_need)
    try:
        phys = pltpu.get_tpu_info().vmem_capacity_bytes
        vmem_limit = min(vmem_limit, (phys * 7) // 8)
    except Exception:
        vmem_limit = min(vmem_limit, 56 << 20)        # safe even on v7x (64 MiB)

    kernel = functools.partial(_scse_kernel, inv_hw=1.0 / float(HW))

    out = pl.pallas_call(
        kernel,
        out_shape=jax.ShapeDtypeStruct((Np, C, HWp), x.dtype),
        grid_spec=pltpu.PrefetchScalarGridSpec(
            num_scalar_prefetch=0,
            grid=(Np // NB,),
            in_specs=[
                pl.BlockSpec((NB, C, HWp), lambda n: (n, 0, 0)),        # x
                pl.BlockSpec((C, Cr), lambda n: (0, 0)),                # w1
                pl.BlockSpec((1, Cr), lambda n: (0, 0)),                # b1
                pl.BlockSpec((C, Cr), lambda n: (0, 0)),                # w2t
                pl.BlockSpec((C, 1), lambda n: (0, 0)),                 # b2
                pl.BlockSpec((C, 1), lambda n: (0, 0)),                 # ws
                pl.BlockSpec(memory_space=pltpu.MemorySpace.SMEM),      # bs (scalar)
            ],
            out_specs=pl.BlockSpec((NB, C, HWp), lambda n: (n, 0, 0)),
        ),
        compiler_params=pltpu.CompilerParams(
            dimension_semantics=("parallel",),
            vmem_limit_bytes=int(vmem_limit),
        ),
    )(x, w1, b1, w2t, b2, ws, bs)

    # Crop batch / HW padding and restore NCHW (cheap slices/reshape in XLA).
    out = out[:N, :, :HW]
    return out.reshape(N, C, H, W)


def _reference(x_nchw, w1, b1, w2t, b2, ws, bs):
    """Pure-JAX reference mirroring the PyTorch SCSEModule forward."""
    xf = x_nchw.astype(jnp.float32)
    # cSE
    pooled = jnp.mean(xf, axis=(2, 3))                         # [N, C]
    h = jnp.maximum(pooled @ w1 + b1, 0.0)                     # [N, Cr]
    cse = jax.nn.sigmoid(h @ w2t.T + b2[:, 0][None, :])        # [N, C]
    # sSE
    x_nhwc = jnp.transpose(xf, (0, 2, 3, 1))                   # [N, H, W, C]
    sse = jax.nn.sigmoid(x_nhwc @ ws + bs[0, 0])               # [N, H, W, 1]
    sse = jnp.transpose(sse, (0, 3, 1, 2))                     # [N, 1, H, W]
    out = xf * cse[:, :, None, None] + xf * sse
    return out.astype(x_nchw.dtype)


def _make_params(key, C, Cr):
    k_w1, k_b1, k_w2, k_b2, k_ws, k_bs = jax.random.split(key, 6)
    w1 = jax.random.normal(k_w1, (C, Cr), dtype=jnp.float32) * 0.2   # cSE conv1: C -> C/r
    b1 = jax.random.normal(k_b1, (1, Cr), dtype=jnp.float32) * 0.1
    w2t = jax.random.normal(k_w2, (C, Cr), dtype=jnp.float32) * 0.2  # cSE conv2 (C/r -> C), transposed
    b2 = jax.random.normal(k_b2, (C, 1), dtype=jnp.float32) * 0.1
    ws = jax.random.normal(k_ws, (C, 1), dtype=jnp.float32) * 0.2    # sSE conv: C -> 1
    bs = jax.random.normal(k_bs, (1, 1), dtype=jnp.float32) * 0.1
    return w1, b1, w2t, b2, ws, bs


if __name__ == "__main__":
    # Module config: Attention(name="scse", in_channels=32, reduction=16)
    C, reduction = 32, 16
    Cr = C // reduction               # = 2

    key = jax.random.PRNGKey(0)
    k_p, k_x1, k_x2 = jax.random.split(key, 3)
    params = _make_params(k_p, C, Cr)

    # Case 1: HW already a multiple of 128 (no padding, batch packing NB=2).
    x1 = jax.random.normal(k_x1, (2, C, 16, 16), dtype=jnp.float32)
    out1 = jax.block_until_ready(scse_attention(x1, *params))
    ref1 = _reference(x1, *params)
    assert out1.shape == x1.shape, out1.shape
    assert jnp.allclose(out1, ref1, atol=1e-5, rtol=1e-5), "mismatch (16x16)"

    # Case 2: HW = 49 -> padded to 128 lanes (true-HW mean, cropped output).
    x2 = jax.random.normal(k_x2, (3, C, 7, 7), dtype=jnp.float32)
    out2 = jax.block_until_ready(scse_attention(x2, *params))
    ref2 = _reference(x2, *params)
    assert out2.shape == x2.shape, out2.shape
    assert jnp.allclose(out2, ref2, atol=1e-5, rtol=1e-5), "mismatch (7x7)"

    print("KERNEL_OK")
</pallas_src>

<mosaic_0001>
module attributes {stable_mosaic.version = 11 : i64} {
  func.func @_scse_kernel(%arg0: i32, %arg1: memref<2x32x256xf32, #tpu.memory_space<vmem>>, %arg2: memref<32x2xf32, #tpu.memory_space<vmem>>, %arg3: memref<1x2xf32, #tpu.memory_space<vmem>>, %arg4: memref<32x2xf32, #tpu.memory_space<vmem>>, %arg5: memref<32x1xf32, #tpu.memory_space<vmem>>, %arg6: memref<32x1xf32, #tpu.memory_space<vmem>>, %arg7: memref<1x1xf32, #tpu.memory_space<smem>>, %arg8: memref<2x32x256xf32, #tpu.memory_space<vmem>>) attributes {dimension_semantics = [#tpu.dimension_semantics<parallel>], iteration_bounds = array<i64: 1>, scalar_prefetch = 0 : i64, scratch_operands = 0 : i64, tpu.core_type = #tpu.core_type<tc>, window_params = [{transform_indices = @transform_0, window_bounds = array<i64: 2, 32, 256>}, {pipeline_mode = #tpu.pipeline_mode<synchronous>, transform_indices = @transform_1, window_bounds = array<i64: 32, 2>}, {pipeline_mode = #tpu.pipeline_mode<synchronous>, transform_indices = @transform_2, window_bounds = array<i64: 1, 2>}, {pipeline_mode = #tpu.pipeline_mode<synchronous>, transform_indices = @transform_3, window_bounds = array<i64: 32, 2>}, {pipeline_mode = #tpu.pipeline_mode<synchronous>, transform_indices = @transform_4, window_bounds = array<i64: 32, 1>}, {pipeline_mode = #tpu.pipeline_mode<synchronous>, transform_indices = @transform_5, window_bounds = array<i64: 32, 1>}, {transform_indices = @transform_6, window_bounds = array<i64: 1, 1>}, {transform_indices = @transform_7, window_bounds = array<i64: 2, 32, 256>}]} {
    %c0 = arith.constant 0 : index
    %c0_0 = arith.constant 0 : index
    %c0_1 = arith.constant 0 : index
    %0 = vector.load %arg1[%c0, %c0_0, %c0_1] : memref<2x32x256xf32, #tpu.memory_space<vmem>>, vector<2x32x256xf32>
    %cst = arith.constant dense<0.000000e+00> : vector<2x32xf32>
    %1 = vector.multi_reduction <add>, %0, %cst [2] : vector<2x32x256xf32> to vector<2x32xf32>
    %2 = vector.shape_cast %1 : vector<2x32xf32> to vector<2x32x1xf32>
    %cst_2 = arith.constant 3.906250e-03 : f32
    %3 = vector.broadcast %cst_2 : f32 to vector<2x32x1xf32>
    %4 = arith.mulf %2, %3 : vector<2x32x1xf32>
    %c0_3 = arith.constant 0 : index
    %c0_4 = arith.constant 0 : index
    %5 = vector.load %arg2[%c0_3, %c0_4] : memref<32x2xf32, #tpu.memory_space<vmem>>, vector<32x2xf32>
    %6 = vector.shape_cast %5 : vector<32x2xf32> to vector<1x32x2xf32>
    %7 = vector.broadcast %6 : vector<1x32x2xf32> to vector<2x32x2xf32>
    %8 = vector.broadcast %4 : vector<2x32x1xf32> to vector<2x32x2xf32>
    %9 = arith.mulf %7, %8 : vector<2x32x2xf32>
    %cst_5 = arith.constant dense<0.000000e+00> : vector<2x2xf32>
    %10 = vector.multi_reduction <add>, %9, %cst_5 [1] : vector<2x32x2xf32> to vector<2x2xf32>
    %11 = vector.shape_cast %10 : vector<2x2xf32> to vector<2x1x2xf32>
    %c0_6 = arith.constant 0 : index
    %c0_7 = arith.constant 0 : index
    %12 = vector.load %arg3[%c0_6, %c0_7] : memref<1x2xf32, #tpu.memory_space<vmem>>, vector<1x2xf32>
    %13 = vector.shape_cast %12 : vector<1x2xf32> to vector<1x1x2xf32>
    %14 = vector.broadcast %13 : vector<1x1x2xf32> to vector<2x1x2xf32>
    %15 = arith.addf %11, %14 : vector<2x1x2xf32>
    %cst_8 = arith.constant 0.000000e+00 : f32
    %16 = vector.broadcast %cst_8 : f32 to vector<2x1x2xf32>
    %17 = arith.maximumf %15, %16 : vector<2x1x2xf32>
    %c0_9 = arith.constant 0 : index
    %c0_10 = arith.constant 0 : index
    %18 = vector.load %arg4[%c0_9, %c0_10] : memref<32x2xf32, #tpu.memory_space<vmem>>, vector<32x2xf32>
    %19 = vector.shape_cast %18 : vector<32x2xf32> to vector<1x32x2xf32>
    %20 = vector.broadcast %19 : vector<1x32x2xf32> to vector<2x32x2xf32>
    %21 = vector.broadcast %17 : vector<2x1x2xf32> to vector<2x32x2xf32>
    %22 = arith.mulf %20, %21 : vector<2x32x2xf32>
    %cst_11 = arith.constant dense<0.000000e+00> : vector<2x32xf32>
    %23 = vector.multi_reduction <add>, %22, %cst_11 [2] : vector<2x32x2xf32> to vector<2x32xf32>
    %24 = vector.shape_cast %23 : vector<2x32xf32> to vector<2x32x1xf32>
    %c0_12 = arith.constant 0 : index
    %c0_13 = arith.constant 0 : index
    %25 = vector.load %arg5[%c0_12, %c0_13] : memref<32x1xf32, #tpu.memory_space<vmem>>, vector<32x1xf32>
    %26 = vector.shape_cast %25 : vector<32x1xf32> to vector<1x32x1xf32>
    %27 = vector.broadcast %26 : vector<1x32x1xf32> to vector<2x32x1xf32>
    %28 = arith.addf %24, %27 : vector<2x32x1xf32>
    %29 = arith.negf %28 : vector<2x32x1xf32>
    %30 = math.exp %29 : vector<2x32x1xf32>
    %cst_14 = arith.constant 1.000000e+00 : f32
    %31 = vector.broadcast %cst_14 : f32 to vector<2x32x1xf32>
    %32 = arith.addf %31, %30 : vector<2x32x1xf32>
    %33 = arith.divf %31, %32 : vector<2x32x1xf32>
    %c0_15 = arith.constant 0 : index
    %c0_16 = arith.constant 0 : index
    %34 = vector.load %arg6[%c0_15, %c0_16] : memref<32x1xf32, #tpu.memory_space<vmem>>, vector<32x1xf32>
    %35 = vector.shape_cast %34 : vector<32x1xf32> to vector<1x32x1xf32>
    %36 = vector.broadcast %35 : vector<1x32x1xf32> to vector<2x32x256xf32>
    %37 = arith.mulf %0, %36 : vector<2x32x256xf32>
    %cst_17 = arith.constant dense<0.000000e+00> : vector<2x256xf32>
    %38 = vector.multi_reduction <add>, %37, %cst_17 [1] : vector<2x32x256xf32> to vector<2x256xf32>
    %39 = vector.shape_cast %38 : vector<2x256xf32> to vector<2x1x256xf32>
    %c0_18 = arith.constant 0 : index
    %c0_19 = arith.constant 0 : index
    %40 = memref.load %arg7[%c0_18, %c0_19] : memref<1x1xf32, #tpu.memory_space<smem>>
    %41 = vector.broadcast %40 : f32 to vector<2x1x256xf32>
    %42 = arith.addf %39, %41 : vector<2x1x256xf32>
    %43 = arith.negf %42 : vector<2x1x256xf32>
    %44 = math.exp %43 : vector<2x1x256xf32>
    %cst_20 = arith.constant 1.000000e+00 : f32
    %45 = vector.broadcast %cst_20 : f32 to vector<2x1x256xf32>
    %46 = arith.addf %45, %44 : vector<2x1x256xf32>
    %47 = arith.divf %45, %46 : vector<2x1x256xf32>
    %48 = vector.broadcast %33 : vector<2x32x1xf32> to vector<2x32x256xf32>
    %49 = vector.broadcast %47 : vector<2x1x256xf32> to vector<2x32x256xf32>
    %50 = arith.addf %48, %49 : vector<2x32x256xf32>
    %51 = arith.mulf %0, %50 : vector<2x32x256xf32>
    %c0_21 = arith.constant 0 : index
    %c0_22 = arith.constant 0 : index
    %c0_23 = arith.constant 0 : index
    %52 = vector.load %arg8[%c0_21, %c0_22, %c0_23] : memref<2x32x256xf32, #tpu.memory_space<vmem>>, vector<2x32x256xf32>
    tpu.vector_store %arg8[%c0_21, %c0_22, %c0_23], %51 {strides = array<i32>} : memref<2x32x256xf32, #tpu.memory_space<vmem>>, vector<2x32x256xf32>,
    return
  }
  func.func @transform_0(%arg0: i32) -> (i32, i32, i32) {
    %c0_i32 = arith.constant 0 : i32
    %c0_i32_0 = arith.constant 0 : i32
    %c0_i32_1 = arith.constant 0 : i32
    return %arg0, %c0_i32, %c0_i32_0 : i32, i32, i32
  }
  func.func @transform_1(%arg0: i32) -> (i32, i32) {
    %c0_i32 = arith.constant 0 : i32
    %c0_i32_0 = arith.constant 0 : i32
    %c0_i32_1 = arith.constant 0 : i32
    return %c0_i32, %c0_i32_0 : i32, i32
  }
  func.func @transform_2(%arg0: i32) -> (i32, i32) {
    %c0_i32 = arith.constant 0 : i32
    %c0_i32_0 = arith.constant 0 : i32
    %c0_i32_1 = arith.constant 0 : i32
    return %c0_i32, %c0_i32_0 : i32, i32
  }
  func.func @transform_3(%arg0: i32) -> (i32, i32) {
    %c0_i32 = arith.constant 0 : i32
    %c0_i32_0 = arith.constant 0 : i32
    %c0_i32_1 = arith.constant 0 : i32
    return %c0_i32, %c0_i32_0 : i32, i32
  }
  func.func @transform_4(%arg0: i32) -> (i32, i32) {
    %c0_i32 = arith.constant 0 : i32
    %c0_i32_0 = arith.constant 0 : i32
    %c0_i32_1 = arith.constant 0 : i32
    return %c0_i32, %c0_i32_0 : i32, i32
  }
  func.func @transform_5(%arg0: i32) -> (i32, i32) {
    %c0_i32 = arith.constant 0 : i32
    %c0_i32_0 = arith.constant 0 : i32
    %c0_i32_1 = arith.constant 0 : i32
    return %c0_i32, %c0_i32_0 : i32, i32
  }
  func.func @transform_6(%arg0: i32) -> (i32, i32) {
    %c0_i32 = arith.constant 0 : i32
    %c0_i32_0 = arith.constant 0 : i32
    %c0_i32_1 = arith.constant 0 : i32
    return %c0_i32, %c0_i32_0 : i32, i32
  }
  func.func @transform_7(%arg0: i32) -> (i32, i32, i32) {
    %c0_i32 = arith.constant 0 : i32
    %c0_i32_0 = arith.constant 0 : i32
    %c0_i32_1 = arith.constant 0 : i32
    return %arg0, %c0_i32, %c0_i32_0 : i32, i32, i32
  }
}

</mosaic_0001>

<llo_original>
// kernel: tpu_custom_call.1
$region0: #{tpu_custom_call.1}
  #allocation0 [shape = 'u32[]', space=smem, size = 0x4, offset = 0x4, fixed_abs, tag = 'smem constant byte address 0x4 - core index']
  #allocation1 [shape = 'u32[144,128]{1,0:T(1,128)}', space=vmem, size = 0x12000, scoped, tag = 'internal scratch']
  #allocation2 [shape = 'f32[1,1]{1,0:T(1,128)S(6)}', space=smem, size = 0x200, scoped, tag = 'scoped memory for tpu_custom_call.1']
  %s0 = inlined_call_operand.vmem [shape: f32[2,32,256], index: 0, kind: input, shape index: {}]
  %s1 = inlined_call_operand.vmem [shape: f32[32,2], index: 1, kind: input, shape index: {}]
  %s2 = inlined_call_operand.vmem [shape: f32[1,2], index: 2, kind: input, shape index: {}]
  %s3 = inlined_call_operand.vmem [shape: f32[32,2], index: 3, kind: input, shape index: {}]
  %s4 = inlined_call_operand.vmem [shape: f32[32,1], index: 4, kind: input, shape index: {}]
  %s5 = inlined_call_operand.vmem [shape: f32[32,1], index: 5, kind: input, shape index: {}]
  %s6 = inlined_call_operand.<no memory space> [shape: f32[1,1], index: 6, kind: input, shape index: {}]
  %s7 = inlined_call_operand.hbm [shape: f32[2,32,256], index: 7, kind: output, shape index: {}]
  %s8 = sld [smem:[#allocation0]]
  $region38: #{tpu_custom_call.1} parent=0
    _
  %s10 = ssub.s32 1, %s8
  %s11 = scalar_select 0, %s10, %s8
  %12 = sst [smem:[#allocation2]] %s6
  $region1: #{tpu_custom_call.1} parent=0
    #allocation3 [shape = 'u8[65536]{0}', space=vmem, size = 0x10000, scoped, tag = 'output window, operand 0, single buffered']
    #allocation4 [shape = 's32[1]{0}', space=sflag, size = 0x4, scoped, tag = 'scoped memory for tpu_custom_call.1']
    %13 = vsyncpa [#allocation4], 0
    // Predicated region
    $region2: #{tpu_custom_call.1} parent=1 // pred_check
      _
    $region3: #{tpu_custom_call.1} parent=1 // pred_check_branch
      %15 = sbr.rel (0) target = $region5
    $region4: #{tpu_custom_call.1} parent=1 // pred_region
      _
    $region5: #{tpu_custom_call.1} parent=1 // pred_fallthru
      _
    // Predicated region
    $region6: #{tpu_custom_call.1} parent=1 // pred_check
      _
    $region7: #{tpu_custom_call.1} parent=1 // pred_check_branch
      %17 = sbr.rel (0) target = $region9
    $region8: #{tpu_custom_call.1} parent=1 // pred_region
      _
    $region9: #{tpu_custom_call.1} parent=1 // pred_fallthru
      _
    // Predicated region
    $region10: #{tpu_custom_call.1} parent=1 // pred_check
      _
    $region11: #{tpu_custom_call.1} parent=1 // pred_check_branch
      %19 = sbr.rel (0) target = $region13
    $region12: #{tpu_custom_call.1} parent=1 // pred_region
      _
    $region13: #{tpu_custom_call.1} parent=1 // pred_fallthru
      _
    // Predicated region
    $region14: #{tpu_custom_call.1} parent=1 // pred_check
      _
    $region15: #{tpu_custom_call.1} parent=1 // pred_check_branch
      %21 = sbr.rel (0) target = $region17
    $region16: #{tpu_custom_call.1} parent=1 // pred_region
      _
    $region17: #{tpu_custom_call.1} parent=1 // pred_fallthru
      _
    // Predicated region
    $region18: #{tpu_custom_call.1} parent=1 // pred_check
      _
    $region19: #{tpu_custom_call.1} parent=1 // pred_check_branch
      %23 = sbr.rel (0) target = $region21
    $region20: #{tpu_custom_call.1} parent=1 // pred_region
      _
    $region21: #{tpu_custom_call.1} parent=1 // pred_fallthru
      _
    // Predicated region
    $region22: #{tpu_custom_call.1} parent=1 // pred_check
      _
    $region23: #{tpu_custom_call.1} parent=1 // pred_check_branch
      %25 = sbr.rel (0) target = $region25
    $region24: #{tpu_custom_call.1} parent=1 // pred_region
      _
    $region25: #{tpu_custom_call.1} parent=1 // pred_fallthru
      _
    // Predicated region
    $region26: #{tpu_custom_call.1} parent=1 // pred_check
      _
    $region27: #{tpu_custom_call.1} parent=1 // pred_check_branch
      %27 = sbr.rel (0) target = $region29
    $region28: #{tpu_custom_call.1} parent=1 // pred_region
      _
    $region29: #{tpu_custom_call.1} parent=1 // pred_fallthru
      _
    %v28 = vld [vmem:[%s0] sm:$0xff]
    %v29 = vld [vmem:[%s0 + $0x8] sm:$0xff]
    %v30 = vld [vmem:[%s0 + $0x10] sm:$0xff]
    %v31 = vld [vmem:[%s0 + $0x18] sm:$0xff]
    %v32 = vld [vmem:[%s0 + $0x20] sm:$0xff]
    %v33 = vld [vmem:[%s0 + $0x28] sm:$0xff]
    %v34 = vld [vmem:[%s0 + $0x30] sm:$0xff]
    %v35 = vld [vmem:[%s0 + $0x38] sm:$0xff]
    %v36 = vld [vmem:[%s0 + $0x40] sm:$0xff]
    %v37 = vld [vmem:[%s0 + $0x48] sm:$0xff]
    %v38 = vld [vmem:[%s0 + $0x50] sm:$0xff]
    %v39 = vld [vmem:[%s0 + $0x58] sm:$0xff]
    %v40 = vld [vmem:[%s0 + $0x60] sm:$0xff]
    %v41 = vld [vmem:[%s0 + $0x68] sm:$0xff]
    %v42 = vld [vmem:[%s0 + $0x70] sm:$0xff]
    %v43 = vld [vmem:[%s0 + $0x78] sm:$0xff]
    %v44 = vadd.f32 %v28, %v29
    %45 = vadd.xlane.f32.xlu0 %v44
    %v46 = vpop.xlane.xlu0 %45
    %v47 = vadd.f32 %v30, %v31
    %48 = vadd.xlane.f32.xlu0 %v47
    %v49 = vpop.xlane.xlu0 %48
    %v50 = vadd.f32 %v32, %v33
    %51 = vadd.xlane.f32.xlu0 %v50
    %v52 = vpop.xlane.xlu0 %51
    %v53 = vadd.f32 %v34, %v35
    %54 = vadd.xlane.f32.xlu0 %v53
    %v55 = vpop.xlane.xlu0 %54
    %v56 = vadd.f32 %v36, %v37
    %57 = vadd.xlane.f32.xlu0 %v56
    %v58 = vpop.xlane.xlu0 %57
    %v59 = vadd.f32 %v38, %v39
    %60 = vadd.xlane.f32.xlu0 %v59
    %v61 = vpop.xlane.xlu0 %60
    %v62 = vadd.f32 %v40, %v41
    %63 = vadd.xlane.f32.xlu0 %v62
    %v64 = vpop.xlane.xlu0 %63
    %v65 = vadd.f32 %v42, %v43
    %66 = vadd.xlane.f32.xlu0 %v65
    %v67 = vpop.xlane.xlu0 %66
    %v68 = vmul.f32 %v46, 0.00390625
    %v69 = vmul.f32 %v49, 0.00390625
    %v70 = vmul.f32 %v52, 0.00390625
    %v71 = vmul.f32 %v55, 0.00390625
    %v72 = vmul.f32 %v58, 0.00390625
    %v73 = vmul.f32 %v61, 0.00390625
    %v74 = vmul.f32 %v64, 0.00390625
    %v75 = vmul.f32 %v67, 0.00390625
    %v76 = vld [vmem:[%s1] sm:$0xff]
    %v77 = vld [vmem:[%s1 + $0x8] sm:$0xff]
    %v78 = vld [vmem:[%s1 + $0x10] sm:$0xff]
    %v79 = vld [vmem:[%s1 + $0x18] sm:$0xff]
    %v80 = vmul.f32 %v76, %v68
    %v81 = vmul.f32 %v77, %v69
    %v82 = vmul.f32 %v78, %v70
    %v83 = vmul.f32 %v79, %v71
    %v84 = vmul.f32 %v76, %v72
    %v85 = vmul.f32 %v77, %v73
    %v86 = vmul.f32 %v78, %v74
    %v87 = vmul.f32 %v79, %v75
    %vm88 = vcmask 15360
    %v89 = vsel %vm88, %v80, 0.0
    %v90 = vsel %vm88, %v81, 0.0
    %v91 = vadd.f32 %v89, %v90
    %v92 = vsel %vm88, %v82, 0.0
    %v93 = vadd.f32 %v91, %v92
    %v94 = vsel %vm88, %v83, 0.0
    %v95 = vadd.f32 %v93, %v94
    %v96 = vrot.slane %v95, 4
    %v97 = vadd.f32 %v95, %v96
    %v98 = vrot.slane %v97, 2
    %v99 = vadd.f32 %v97, %v98
    %v100 = vrot.slane %v99, 1
    %v101 = vadd.f32 %v99, %v100
    %v102 = vsel %vm88, %v84, 0.0
    %v103 = vsel %vm88, %v85, 0.0
    %v104 = vadd.f32 %v102, %v103
    %v105 = vsel %vm88, %v86, 0.0
    %v106 = vadd.f32 %v104, %v105
    %v107 = vsel %vm88, %v87, 0.0
    %v108 = vadd.f32 %v106, %v107
    %v109 = vrot.slane %v108, 4
    %v110 = vadd.f32 %v108, %v109
    %v111 = vrot.slane %v110, 2
    %v112 = vadd.f32 %v110, %v111
    %v113 = vrot.slane %v112, 1
    %v114 = vadd.f32 %v112, %v113
    %v115 = vld [vmem:[%s2] sm:$0x1]
    %v116 = vadd.f32 %v101, %v115
    %v117 = vadd.f32 %v114, %v115
    %v118 = vmax.f32 %v116, 0.0
    %v119 = vmax.f32 %v117, 0.0
    %v120 = vld [vmem:[%s3] sm:$0xff]
    %v121 = vld [vmem:[%s3 + $0x8] sm:$0xff]
    %v122 = vld [vmem:[%s3 + $0x10] sm:$0xff]
    %v123 = vld [vmem:[%s3 + $0x18] sm:$0xff]
    %v124 = vlaneseq
    %v125 = vshrl.u32 %v124, 7
    %v126 = vsub.s32 0, %v125
    %v127 = vrot.slane %v118, %v126
    %v128 = vlaneseq
    %v129 = vshrl.u32 %v128, 7
    %v130 = vsub.s32 0, %v129
    %v131 = vrot.slane %v119, %v130
    %v132 = vmul.f32 %v120, %v127
    %v133 = vmul.f32 %v121, %v127
    %v134 = vmul.f32 %v122, %v127
    %v135 = vmul.f32 %v123, %v127
    %v136 = vmul.f32 %v120, %v131
    %v137 = vmul.f32 %v121, %v131
    %v138 = vmul.f32 %v122, %v131
    %v139 = vmul.f32 %v123, %v131
    %v140 = vsel %vm88, %v132, 0.0
    %141 = vadd.xlane.f32.xlu0 %v140
    %v142 = vpop.xlane.xlu0 %141
    %v143 = vsel %vm88, %v133, 0.0
    %144 = vadd.xlane.f32.xlu0 %v143
    %v145 = vpop.xlane.xlu0 %144
    %v146 = vsel %vm88, %v134, 0.0
    %147 = vadd.xlane.f32.xlu0 %v146
    %v148 = vpop.xlane.xlu0 %147
    %v149 = vsel %vm88, %v135, 0.0
    %150 = vadd.xlane.f32.xlu0 %v149
    %v151 = vpop.xlane.xlu0 %150
    %v152 = vsel %vm88, %v136, 0.0
    %153 = vadd.xlane.f32.xlu0 %v152
    %v154 = vpop.xlane.xlu0 %153
    %v155 = vsel %vm88, %v137, 0.0
    %156 = vadd.xlane.f32.xlu0 %v155
    %v157 = vpop.xlane.xlu0 %156
    %v158 = vsel %vm88, %v138, 0.0
    %159 = vadd.xlane.f32.xlu0 %v158
    %v160 = vpop.xlane.xlu0 %159
    %v161 = vsel %vm88, %v139, 0.0
    %162 = vadd.xlane.f32.xlu0 %v161
    %v163 = vpop.xlane.xlu0 %162
    %v164 = vld [vmem:[%s4] sm:$0xff]
    %v165 = vld [vmem:[%s4 + $0x8] sm:$0xff]
    %v166 = vld [vmem:[%s4 + $0x10] sm:$0xff]
    %v167 = vld [vmem:[%s4 + $0x18] sm:$0xff]
    %v168 = vadd.f32 %v142, %v164
    %v169 = vadd.f32 %v145, %v165
    %v170 = vadd.f32 %v148, %v166
    %v171 = vadd.f32 %v151, %v167
    %v172 = vadd.f32 %v154, %v164
    %v173 = vadd.f32 %v157, %v165
    %v174 = vadd.f32 %v160, %v166
    %v175 = vadd.f32 %v163, %v167
    %v176 = vxor.u32 %v168, 2147483648
    %v177 = vxor.u32 %v169, 2147483648
    %v178 = vxor.u32 %v170, 2147483648
    %v179 = vxor.u32 %v171, 2147483648
    %v180 = vxor.u32 %v172, 2147483648
    %v181 = vxor.u32 %v173, 2147483648
    %v182 = vxor.u32 %v174, 2147483648
    %v183 = vxor.u32 %v175, 2147483648
    %v184 = vmul.f32 %v176, 1.442695
    %v185 = vpow.pop %v184
    %v186 = vmul.f32 %v177, 1.442695
    %v187 = vpow.pop %v186
    %v188 = vmul.f32 %v178, 1.442695
    %v189 = vpow.pop %v188
    %v190 = vmul.f32 %v179, 1.442695
    %v191 = vpow.pop %v190
    %v192 = vmul.f32 %v180, 1.442695
    %v193 = vpow.pop %v192
    %v194 = vmul.f32 %v181, 1.442695
    %v195 = vpow.pop %v194
    %v196 = vmul.f32 %v182, 1.442695
    %v197 = vpow.pop %v196
    %v198 = vmul.f32 %v183, 1.442695
    %v199 = vpow.pop %v198
    %v200 = vadd.f32 %v185, 1.0
    %v201 = vadd.f32 %v187, 1.0
    %v202 = vadd.f32 %v189, 1.0
    %v203 = vadd.f32 %v191, 1.0
    %v204 = vadd.f32 %v193, 1.0
    %v205 = vadd.f32 %v195, 1.0
    %v206 = vadd.f32 %v197, 1.0
    %v207 = vadd.f32 %v199, 1.0
    %v208 = vrcp.pop %v200
    %v209 = vmul.f32 1.0, %v208
    %v210 = vrcp.pop %v201
    %v211 = vmul.f32 1.0, %v210
    %v212 = vrcp.pop %v202
    %v213 = vmul.f32 1.0, %v212
    %v214 = vrcp.pop %v203
    %v215 = vmul.f32 1.0, %v214
    %v216 = vrcp.pop %v204
    %v217 = vmul.f32 1.0, %v216
    %v218 = vrcp.pop %v205
    %v219 = vmul.f32 1.0, %v218
    %v220 = vrcp.pop %v206
    %v221 = vmul.f32 1.0, %v220
    %v222 = vrcp.pop %v207
    %v223 = vmul.f32 1.0, %v222
    %v224 = vld [vmem:[%s5] sm:$0xff]
    %v225 = vld [vmem:[%s5 + $0x8] sm:$0xff]
    %v226 = vld [vmem:[%s5 + $0x10] sm:$0xff]
    %v227 = vld [vmem:[%s5 + $0x18] sm:$0xff]
    %229 = vset.pattern.permute.xlu0 0
    %230 = vperm.xlu0 %229, %v224
    %v231 = vpop.permute.xlu0 %230
    %234 = vset.pattern.permute.xlu0 0
    %235 = vperm.xlu0 %234, %v225
    %v236 = vpop.permute.xlu0 %235
    %239 = vset.pattern.permute.xlu0 0
    %240 = vperm.xlu0 %239, %v226
    %v241 = vpop.permute.xlu0 %240
    %244 = vset.pattern.permute.xlu0 0
    %245 = vperm.xlu0 %244, %v227
    %v246 = vpop.permute.xlu0 %245
    %v248 = vmul.f32 %v28, %v231
    %v249 = vmul.f32 %v29, %v231
    %v250 = vmul.f32 %v30, %v236
    %v251 = vmul.f32 %v31, %v236
    %v252 = vmul.f32 %v32, %v241
    %v253 = vmul.f32 %v33, %v241
    %v254 = vmul.f32 %v34, %v246
    %v255 = vmul.f32 %v35, %v246
    %v256 = vmul.f32 %v36, %v231
    %v257 = vmul.f32 %v37, %v231
    %v258 = vmul.f32 %v38, %v236
    %v259 = vmul.f32 %v39, %v236
    %v260 = vmul.f32 %v40, %v241
    %v261 = vmul.f32 %v41, %v241
    %v262 = vmul.f32 %v42, %v246
    %v263 = vmul.f32 %v43, %v246
    %v264 = vadd.f32 %v248, %v250
    %v265 = vadd.f32 %v264, %v252
    %v266 = vadd.f32 %v265, %v254
    %v267 = vrot.slane %v266, 4
    %v268 = vadd.f32 %v266, %v267
    %v269 = vrot.slane %v268, 2
    %v270 = vadd.f32 %v268, %v269
    %v271 = vrot.slane %v270, 1
    %v272 = vadd.f32 %v270, %v271
    %v273 = vadd.f32 %v249, %v251
    %v274 = vadd.f32 %v273, %v253
    %v275 = vadd.f32 %v274, %v255
    %v276 = vrot.slane %v275, 4
    %v277 = vadd.f32 %v275, %v276
    %v278 = vrot.slane %v277, 2
    %v279 = vadd.f32 %v277, %v278
    %v280 = vrot.slane %v279, 1
    %v281 = vadd.f32 %v279, %v280
    %v282 = vadd.f32 %v256, %v258
    %v283 = vadd.f32 %v282, %v260
    %v284 = vadd.f32 %v283, %v262
    %v285 = vrot.slane %v284, 4
    %v286 = vadd.f32 %v284, %v285
    %v287 = vrot.slane %v286, 2
    %v288 = vadd.f32 %v286, %v287
    %v289 = vrot.slane %v288, 1
    %v290 = vadd.f32 %v288, %v289
    %v291 = vadd.f32 %v257, %v259
    %v292 = vadd.f32 %v291, %v261
    %v293 = vadd.f32 %v292, %v263
    %v294 = vrot.slane %v293, 4
    %v295 = vadd.f32 %v293, %v294
    %v296 = vrot.slane %v295, 2
    %v297 = vadd.f32 %v295, %v296
    %v298 = vrot.slane %v297, 1
    %v299 = vadd.f32 %v297, %v298
    %s300 = sld [smem:[#allocation2]]
    %v301 = vstv %s300
    %v302 = vadd.f32 %v272, %v301
    %v303 = vadd.f32 %v281, %v301
    %v304 = vadd.f32 %v290, %v301
    %v305 = vadd.f32 %v299, %v301
    %v306 = vxor.u32 %v302, 2147483648
    %v307 = vxor.u32 %v303, 2147483648
    %v308 = vxor.u32 %v304, 2147483648
    %v309 = vxor.u32 %v305, 2147483648
    %v310 = vmul.f32 %v306, 1.442695
    %v311 = vpow.pop %v310
    %v312 = vmul.f32 %v307, 1.442695
    %v313 = vpow.pop %v312
    %v314 = vmul.f32 %v308, 1.442695
    %v315 = vpow.pop %v314
    %v316 = vmul.f32 %v309, 1.442695
    %v317 = vpow.pop %v316
    %v318 = vadd.f32 %v311, 1.0
    %v319 = vadd.f32 %v313, 1.0
    %v320 = vadd.f32 %v315, 1.0
    %v321 = vadd.f32 %v317, 1.0
    %v322 = vrcp.pop %v318
    %v323 = vmul.f32 1.0, %v322
    %v324 = vrcp.pop %v319
    %v325 = vmul.f32 1.0, %v324
    %v326 = vrcp.pop %v320
    %v327 = vmul.f32 1.0, %v326
    %v328 = vrcp.pop %v321
    %v329 = vmul.f32 1.0, %v328
    %331 = vset.pattern.permute.xlu0 0
    %332 = vperm.xlu0 %331, %v209
    %v333 = vpop.permute.xlu0 %332
    %336 = vset.pattern.permute.xlu0 0
    %337 = vperm.xlu0 %336, %v211
    %v338 = vpop.permute.xlu0 %337
    %341 = vset.pattern.permute.xlu0 0
    %342 = vperm.xlu0 %341, %v213
    %v343 = vpop.permute.xlu0 %342
    %346 = vset.pattern.permute.xlu0 0
    %347 = vperm.xlu0 %346, %v215
    %v348 = vpop.permute.xlu0 %347
    %351 = vset.pattern.permute.xlu0 0
    %352 = vperm.xlu0 %351, %v217
    %v353 = vpop.permute.xlu0 %352
    %356 = vset.pattern.permute.xlu0 0
    %357 = vperm.xlu0 %356, %v219
    %v358 = vpop.permute.xlu0 %357
    %361 = vset.pattern.permute.xlu0 0
    %362 = vperm.xlu0 %361, %v221
    %v363 = vpop.permute.xlu0 %362
    %366 = vset.pattern.permute.xlu0 0
    %367 = vperm.xlu0 %366, %v223
    %v368 = vpop.permute.xlu0 %367
    %v370 = vadd.f32 %v333, %v323
    %v371 = vadd.f32 %v333, %v325
    %v372 = vadd.f32 %v338, %v323
    %v373 = vadd.f32 %v338, %v325
    %v374 = vadd.f32 %v343, %v323
    %v375 = vadd.f32 %v343, %v325
    %v376 = vadd.f32 %v348, %v323
    %v377 = vadd.f32 %v348, %v325
    %v378 = vadd.f32 %v353, %v327
    %v379 = vadd.f32 %v353, %v329
    %v380 = vadd.f32 %v358, %v327
    %v381 = vadd.f32 %v358, %v329
    %v382 = vadd.f32 %v363, %v327
    %v383 = vadd.f32 %v363, %v329
    %v384 = vadd.f32 %v368, %v327
    %v385 = vadd.f32 %v368, %v329
    %v386 = vmul.f32 %v28, %v370
    %v387 = vmul.f32 %v29, %v371
    %v388 = vmul.f32 %v30, %v372
    %v389 = vmul.f32 %v31, %v373
    %v390 = vmul.f32 %v32, %v374
    %v391 = vmul.f32 %v33, %v375
    %v392 = vmul.f32 %v34, %v376
    %v393 = vmul.f32 %v35, %v377
    %v394 = vmul.f32 %v36, %v378
    %v395 = vmul.f32 %v37, %v379
    %v396 = vmul.f32 %v38, %v380
    %v397 = vmul.f32 %v39, %v381
    %v398 = vmul.f32 %v40, %v382
    %v399 = vmul.f32 %v41, %v383
    %v400 = vmul.f32 %v42, %v384
    %v401 = vmul.f32 %v43, %v385
    %402 = vst [vmem:[#allocation3] sm:$0xff] %v386
    %403 = vst [vmem:[#allocation3 + $0x8] sm:$0xff] %v387
    %404 = vst [vmem:[#allocation3 + $0x10] sm:$0xff] %v388
    %405 = vst [vmem:[#allocation3 + $0x18] sm:$0xff] %v389
    %406 = vst [vmem:[#allocation3 + $0x20] sm:$0xff] %v390
    %407 = vst [vmem:[#allocation3 + $0x28] sm:$0xff] %v391
    %408 = vst [vmem:[#allocation3 + $0x30] sm:$0xff] %v392
    %409 = vst [vmem:[#allocation3 + $0x38] sm:$0xff] %v393
    %410 = vst [vmem:[#allocation3 + $0x40] sm:$0xff] %v394
    %411 = vst [vmem:[#allocation3 + $0x48] sm:$0xff] %v395
    %412 = vst [vmem:[#allocation3 + $0x50] sm:$0xff] %v396
    %413 = vst [vmem:[#allocation3 + $0x58] sm:$0xff] %v397
    %414 = vst [vmem:[#allocation3 + $0x60] sm:$0xff] %v398
    %415 = vst [vmem:[#allocation3 + $0x68] sm:$0xff] %v399
    %416 = vst [vmem:[#allocation3 + $0x70] sm:$0xff] %v400
    %417 = vst [vmem:[#allocation3 + $0x78] sm:$0xff] %v401
    // Predicated region
    $region30: #{tpu_custom_call.1} parent=1 // pred_check
      _
    $region31: #{tpu_custom_call.1} parent=1 // pred_check_branch
      %419 = sbr.rel (0) target = $region33
    $region32: #{tpu_custom_call.1} parent=1 // pred_region
      %s421 = ssub.s32 2048, 2048
      %422 = vsyncadd [#allocation4], %s421
      %s423 = sshll.u32 [#allocation3], 4
      %s424 = int_to_ptr.vmem [resolvable:$true] %s423
      %429 = dma.vmem_to_hbm [thread:$0]  %s424, 2048, %s7, [#allocation4], 256, 256, 16
    $region33: #{tpu_custom_call.1} parent=1 // pred_fallthru
      _
    // Predicated region
    $region34: #{tpu_custom_call.1} parent=1 // pred_check
      _
    $region35: #{tpu_custom_call.1} parent=1 // pred_check_branch
      %431 = sbr.rel (0) target = $region37
    $region36: #{tpu_custom_call.1} parent=1 // pred_region
      %432 = dma.done [#allocation4], 2048
    $region37: #{tpu_custom_call.1} parent=1 // pred_fallthru
      _
    %433 = vsyncpa [#allocation4], 1

</llo_original>
